<compile_context>
chip_gen: v6e
topology: v6e:2x2x1
jax: 0.10.0
libtpu: 0.0.40
codegen_flags: <defaults>
</compile_context>

<pallas_src>
import math
import numpy as np
import jax
import jax.numpy as jnp
from jax.experimental import pallas as pl
from jax.experimental.pallas import tpu as pltpu


def calc_coeff(iter_num, max_iter, num_epochs):
    p = float(iter_num + max_iter) / num_epochs / (max_iter / num_epochs)
    alpha = 2.0 / (1.0 + np.exp(-10 * p)) - 1
    return alpha


def _dc1_kernel(x_ref, w1t_ref, b1_ref, w3_ref, b3_ref, o_ref, acc_ref):
    # x:   (TB, TK)         compute dtype (f32 or bf16)
    # w1t: (TK, H)          compute dtype, already transposed to (in, out)
    # b1:  (1, H) f32, w3: (1, H) f32, b3: (1, 1) f32
    # o:   (TB, 1) f32, acc: (TB, H) f32 scratch
    k = pl.program_id(1)

    @pl.when(k == 0)
    def _():
        acc_ref[...] = jnp.zeros_like(acc_ref)

    # fc1 partial: MXU matmul with f32 accumulation (no in-kernel transpose).
    acc_ref[...] += jnp.dot(x_ref[...], w1t_ref[...],
                            preferred_element_type=jnp.float32)

    @pl.when(k == pl.num_programs(1) - 1)
    def _():
        # bias + relu in f32
        h = jnp.maximum(acc_ref[...] + b1_ref[...], 0.0)
        # fc3 as VALU multiply + XLU lane-reduce (avoids a degenerate N=1 MXU matmul)
        out = jnp.sum(h * w3_ref[...], axis=-1, keepdims=True) + b3_ref[...]
        o_ref[...] = out.astype(o_ref.dtype)


def domain_classifier1_forward(x, params, max_iter, *, iter_num=0, num_epochs=10,
                               compute_dtype=jnp.float32):
    """x: (B, H) float32. Returns (B, 1) float32."""
    # Gradient-reversal layer: identity in the forward pass (coeff only scales grads).
    _coeff = calc_coeff(iter_num, max_iter, num_epochs)  # computed for parity; unused fwd

    w1, b1, w3, b3 = params
    B, H = x.shape
    dsize = jnp.dtype(compute_dtype).itemsize

    # One-time layout / dtype prep in the wrapper (outside the kernel).
    w1t = jnp.transpose(w1).astype(compute_dtype)        # (H_in, H_out)
    x_c = x.astype(compute_dtype)
    b1_2d = b1.reshape(1, H).astype(jnp.float32)
    w3_2d = w3.reshape(1, H).astype(jnp.float32)
    b3_2d = b3.reshape(1, 1).astype(jnp.float32)

    # --- tile selection -------------------------------------------------
    # Batch tile: keep activations bounded and give the pipeline >1 step for big B.
    tb = B
    if B > 256:
        for cand in (256, 128, 512, 64):
            if B % cand == 0:
                tb = cand
                break

    # K tile: cap the resident (TK, H) weight block (double-buffered) for v7x VMEM.
    max_weight_block_bytes = 16 * 1024 * 1024
    tk = H
    if H * H * dsize > max_weight_block_bytes:
        for cand in (1024, 512, 256, 128):
            if H % cand == 0 and cand * H * dsize <= max_weight_block_bytes:
                tk = cand
                break

    nb = B // tb
    nk = H // tk

    # Rough VMEM estimate; raise the scoped limit only if we exceed the 32 MiB default.
    est = (2 * (tb * tk + tk * H) * dsize     # double-buffered x + w1t blocks
           + tb * H * 4                       # f32 accumulator scratch
           + 2 * tb * 4                       # output block (double-buffered)
           + 2 * (2 * H + 1) * 4              # b1, w3, b3
           + (2 << 20))                       # headroom
    vmem_limit = est if est > (32 << 20) else None

    compiler_params = pltpu.CompilerParams(
        dimension_semantics=("parallel", "arbitrary"),
        vmem_limit_bytes=vmem_limit,
    )

    return pl.pallas_call(
        _dc1_kernel,
        out_shape=jax.ShapeDtypeStruct((B, 1), jnp.float32),
        grid_spec=pltpu.PrefetchScalarGridSpec(
            num_scalar_prefetch=0,
            grid=(nb, nk),
            in_specs=[
                pl.BlockSpec((tb, tk), lambda i, k: (i, k)),   # x tile
                pl.BlockSpec((tk, H), lambda i, k: (k, 0)),    # w1t tile (K-sliced)
                pl.BlockSpec((1, H), lambda i, k: (0, 0)),     # b1 (resident)
                pl.BlockSpec((1, H), lambda i, k: (0, 0)),     # w3 row (resident)
                pl.BlockSpec((1, 1), lambda i, k: (0, 0)),     # b3 (resident)
            ],
            out_specs=pl.BlockSpec((tb, 1), lambda i, k: (i, 0)),
            scratch_shapes=[pltpu.VMEM((tb, H), jnp.float32)],
        ),
        compiler_params=compiler_params,
    )(x_c, w1t, b1_2d, w3_2d, b3_2d)


def init_params(key, sent_hidden_size):
    """Deterministic synthetic init matching nn.Linear shapes (out_features, in_features)."""
    H = sent_hidden_size
    k1, k2, k3, k4 = jax.random.split(key, 4)
    bound1 = 1.0 / math.sqrt(H)
    w1 = jax.random.uniform(k1, (H, H), jnp.float32, -bound1, bound1)   # fc1.weight
    b1 = jax.random.uniform(k2, (H,), jnp.float32, -bound1, bound1)     # fc1.bias
    w3 = jax.random.uniform(k3, (1, H), jnp.float32, -bound1, bound1)   # fc3.weight
    b3 = jax.random.uniform(k4, (1,), jnp.float32, -bound1, bound1)     # fc3.bias
    return (w1, b1, w3, b3)


def _reference(x, params):
    w1, b1, w3, b3 = params
    return jnp.maximum(x @ w1.T + b1, 0.0) @ w3.T + b3


if __name__ == "__main__":
    max_iter = 100
    key = jax.random.PRNGKey(0)

    # ---- small shape matching the module's nominal use (B=8, H=32), f32 strict check ----
    B, H = 8, 32
    kx, kp, kx2, kp2 = jax.random.split(key, 4)
    x = jax.random.normal(kx, (B, H), dtype=jnp.float32)
    params = init_params(kp, H)

    out = domain_classifier1_forward(x, params, max_iter)
    out = jax.block_until_ready(out)
    ref = _reference(x, params)
    assert out.shape == (B, 1)
    np.testing.assert_allclose(np.asarray(out), np.asarray(ref), rtol=1e-5, atol=1e-5)

    # ---- larger shape to exercise batch tiling + bf16 MXU path (loose tolerance) ----
    B2, H2 = 512, 256
    x2 = jax.random.normal(kx2, (B2, H2), dtype=jnp.float32)
    params2 = init_params(kp2, H2)

    out2_f32 = jax.block_until_ready(
        domain_classifier1_forward(x2, params2, max_iter))
    ref2 = _reference(x2, params2)
    np.testing.assert_allclose(np.asarray(out2_f32), np.asarray(ref2),
                               rtol=1e-4, atol=1e-4)

    out2_bf16 = jax.block_until_ready(
        domain_classifier1_forward(x2, params2, max_iter,
                                   compute_dtype=jnp.bfloat16))
    np.testing.assert_allclose(np.asarray(out2_bf16), np.asarray(ref2),
                               rtol=2e-2, atol=2e-2)

    print("KERNEL_OK")
</pallas_src>

<mosaic_0001>
module attributes {stable_mosaic.version = 11 : i64} {
  func.func @_dc1_kernel(%arg0: i32, %arg1: i32, %arg2: memref<8x32xf32, #tpu.memory_space<vmem>>, %arg3: memref<32x32xf32, #tpu.memory_space<vmem>>, %arg4: memref<1x32xf32, #tpu.memory_space<vmem>>, %arg5: memref<1x32xf32, #tpu.memory_space<vmem>>, %arg6: memref<1x1xf32, #tpu.memory_space<vmem>>, %arg7: memref<8x1xf32, #tpu.memory_space<vmem>>, %arg8: memref<8x32xf32, #tpu.memory_space<vmem>>) attributes {dimension_semantics = [#tpu.dimension_semantics<parallel>, #tpu.dimension_semantics<arbitrary>], iteration_bounds = array<i64: 1, 1>, scalar_prefetch = 0 : i64, scratch_operands = 1 : i64, tpu.core_type = #tpu.core_type<tc>, window_params = [{transform_indices = @transform_0, window_bounds = array<i64: 8, 32>}, {transform_indices = @transform_1, window_bounds = array<i64: 32, 32>}, {pipeline_mode = #tpu.pipeline_mode<synchronous>, transform_indices = @transform_2, window_bounds = array<i64: 1, 32>}, {pipeline_mode = #tpu.pipeline_mode<synchronous>, transform_indices = @transform_3, window_bounds = array<i64: 1, 32>}, {pipeline_mode = #tpu.pipeline_mode<synchronous>, transform_indices = @transform_4, window_bounds = array<i64: 1, 1>}, {transform_indices = @transform_5, window_bounds = array<i64: 8, 1>}]} {
    %c0_i32 = arith.constant 0 : i32
    %0 = arith.cmpi eq, %arg1, %c0_i32 : i32
    %1 = arith.extui %0 : i1 to i32
    %c0_i32_0 = arith.constant 0 : i32
    %2 = arith.cmpi ne, %1, %c0_i32_0 : i32
    scf.if %2 {
      %cst_10 = arith.constant 0.000000e+00 : f32
      %12 = vector.broadcast %cst_10 : f32 to vector<8x32xf32>
      %c0_11 = arith.constant 0 : index
      %c0_12 = arith.constant 0 : index
      %13 = vector.load %arg8[%c0_11, %c0_12] : memref<8x32xf32, #tpu.memory_space<vmem>>, vector<8x32xf32>
      tpu.vector_store %arg8[%c0_11, %c0_12], %12 {strides = array<i32>} : memref<8x32xf32, #tpu.memory_space<vmem>>, vector<8x32xf32>,
    } else {
    }
    %c0 = arith.constant 0 : index
    %c0_1 = arith.constant 0 : index
    %3 = vector.load %arg8[%c0, %c0_1] : memref<8x32xf32, #tpu.memory_space<vmem>>, vector<8x32xf32>
    %c0_2 = arith.constant 0 : index
    %c0_3 = arith.constant 0 : index
    %4 = vector.load %arg2[%c0_2, %c0_3] : memref<8x32xf32, #tpu.memory_space<vmem>>, vector<8x32xf32>
    %c0_4 = arith.constant 0 : index
    %c0_5 = arith.constant 0 : index
    %5 = vector.load %arg3[%c0_4, %c0_5] : memref<32x32xf32, #tpu.memory_space<vmem>>, vector<32x32xf32>
    %cst = arith.constant dense<0.000000e+00> : vector<8x32xf32>
    %6 = tpu.matmul %4, %5, %cst {dimension_numbers = #tpu.dot_dimension_numbers<[1], [0], [0], [1], [0, 0, 1, 1], [], []>} : vector<8x32xf32>, vector<32x32xf32>, vector<8x32xf32> -> vector<8x32xf32>
    %7 = arith.addf %3, %6 : vector<8x32xf32>
    %c0_6 = arith.constant 0 : index
    %c0_7 = arith.constant 0 : index
    %8 = vector.load %arg8[%c0_6, %c0_7] : memref<8x32xf32, #tpu.memory_space<vmem>>, vector<8x32xf32>
    tpu.vector_store %arg8[%c0_6, %c0_7], %7 {strides = array<i32>} : memref<8x32xf32, #tpu.memory_space<vmem>>, vector<8x32xf32>,
    %c0_i32_8 = arith.constant 0 : i32
    %9 = arith.cmpi eq, %arg1, %c0_i32_8 : i32
    %10 = arith.extui %9 : i1 to i32
    %c0_i32_9 = arith.constant 0 : i32
    %11 = arith.cmpi ne, %10, %c0_i32_9 : i32
    scf.if %11 {
      %c0_10 = arith.constant 0 : index
      %c0_11 = arith.constant 0 : index
      %12 = vector.load %arg8[%c0_10, %c0_11] : memref<8x32xf32, #tpu.memory_space<vmem>>, vector<8x32xf32>
      %c0_12 = arith.constant 0 : index
      %c0_13 = arith.constant 0 : index
      %13 = vector.load %arg4[%c0_12, %c0_13] : memref<1x32xf32, #tpu.memory_space<vmem>>, vector<1x32xf32>
      %14 = vector.broadcast %13 : vector<1x32xf32> to vector<8x32xf32>
      %15 = arith.addf %12, %14 : vector<8x32xf32>
      %cst_14 = arith.constant 0.000000e+00 : f32
      %16 = vector.broadcast %cst_14 : f32 to vector<8x32xf32>
      %17 = arith.maximumf %15, %16 : vector<8x32xf32>
      %c0_15 = arith.constant 0 : index
      %c0_16 = arith.constant 0 : index
      %18 = vector.load %arg5[%c0_15, %c0_16] : memref<1x32xf32, #tpu.memory_space<vmem>>, vector<1x32xf32>
      %19 = vector.broadcast %18 : vector<1x32xf32> to vector<8x32xf32>
      %20 = arith.mulf %17, %19 : vector<8x32xf32>
      %cst_17 = arith.constant dense<0.000000e+00> : vector<8xf32>
      %21 = vector.multi_reduction <add>, %20, %cst_17 [1] : vector<8x32xf32> to vector<8xf32>
      %22 = vector.shape_cast %21 : vector<8xf32> to vector<8x1xf32>
      %c0_18 = arith.constant 0 : index
      %c0_19 = arith.constant 0 : index
      %23 = vector.load %arg6[%c0_18, %c0_19] : memref<1x1xf32, #tpu.memory_space<vmem>>, vector<1x1xf32>
      %24 = vector.broadcast %23 : vector<1x1xf32> to vector<8x1xf32>
      %25 = arith.addf %22, %24 : vector<8x1xf32>
      %c0_20 = arith.constant 0 : index
      %c0_21 = arith.constant 0 : index
      %26 = vector.load %arg7[%c0_20, %c0_21] : memref<8x1xf32, #tpu.memory_space<vmem>>, vector<8x1xf32>
      tpu.vector_store %arg7[%c0_20, %c0_21], %25 {strides = array<i32>} : memref<8x1xf32, #tpu.memory_space<vmem>>, vector<8x1xf32>,
    } else {
    }
    return
  }
  func.func @transform_0(%arg0: i32, %arg1: i32) -> (i32, i32) {
    %c0_i32 = arith.constant 0 : i32
    return %arg0, %arg1 : i32, i32
  }
  func.func @transform_1(%arg0: i32, %arg1: i32) -> (i32, i32) {
    %c0_i32 = arith.constant 0 : i32
    %c0_i32_0 = arith.constant 0 : i32
    return %arg1, %c0_i32 : i32, i32
  }
  func.func @transform_2(%arg0: i32, %arg1: i32) -> (i32, i32) {
    %c0_i32 = arith.constant 0 : i32
    %c0_i32_0 = arith.constant 0 : i32
    %c0_i32_1 = arith.constant 0 : i32
    return %c0_i32, %c0_i32_0 : i32, i32
  }
  func.func @transform_3(%arg0: i32, %arg1: i32) -> (i32, i32) {
    %c0_i32 = arith.constant 0 : i32
    %c0_i32_0 = arith.constant 0 : i32
    %c0_i32_1 = arith.constant 0 : i32
    return %c0_i32, %c0_i32_0 : i32, i32
  }
  func.func @transform_4(%arg0: i32, %arg1: i32) -> (i32, i32) {
    %c0_i32 = arith.constant 0 : i32
    %c0_i32_0 = arith.constant 0 : i32
    %c0_i32_1 = arith.constant 0 : i32
    return %c0_i32, %c0_i32_0 : i32, i32
  }
  func.func @transform_5(%arg0: i32, %arg1: i32) -> (i32, i32) {
    %c0_i32 = arith.constant 0 : i32
    %c0_i32_0 = arith.constant 0 : i32
    return %arg0, %c0_i32 : i32, i32
  }
}

</mosaic_0001>

<llo_original>
// kernel: tpu_custom_call.1
$region0: #{tpu_custom_call.1}
  #allocation0 [shape = 'u32[]', space=smem, size = 0x4, offset = 0x4, fixed_abs, tag = 'smem constant byte address 0x4 - core index']
  #allocation1 [shape = 'u32[144,128]{1,0:T(1,128)}', space=vmem, size = 0x12000, scoped, tag = 'internal scratch']
  #allocation2 [shape = 'f32[8,32]{1,0:T(8,128)}', space=vmem, size = 0x1000, scoped, tag = 'scratch operand']
  #allocation3 [shape = 'f32[1,1]{1,0:T(1,128)S(1)}', space=vmem, size = 0x200, scoped, tag = 'scoped memory for tpu_custom_call.1']
  %s0 = inlined_call_operand.hbm [shape: f32[8,32], index: 0, kind: input, shape index: {}]
  %s1 = inlined_call_operand.hbm [shape: f32[32,32], index: 1, kind: input, shape index: {}]
  %s2 = inlined_call_operand.vmem [shape: f32[1,32], index: 2, kind: input, shape index: {}]
  %s3 = inlined_call_operand.vmem [shape: f32[1,32], index: 3, kind: input, shape index: {}]
  %s4 = inlined_call_operand.<no memory space> [shape: f32[1,1], index: 4, kind: input, shape index: {}]
  %s5 = inlined_call_operand.vmem [shape: f32[8,1], index: 5, kind: output, shape index: {}]
  %s6 = sld [smem:[#allocation0]]
  $region46: #{tpu_custom_call.1} parent=0
    _
  %s8 = ssub.s32 1, %s6
  %s9 = scalar_select 0, %s8, %s6
  %v10 = vstv %s4
  %11 = vst [vmem:[#allocation3] sm:$0x1] %v10
  $region1: #{tpu_custom_call.1} parent=0
    #allocation4 [shape = 'u8[4096]{0}', space=vmem, size = 0x1000, scoped, tag = 'input window, operand 0, single buffered']
    #allocation5 [shape = 's32[1]{0}', space=sflag, size = 0x4, scoped, tag = 'scoped memory for tpu_custom_call.1']
    #allocation6 [shape = 'u8[16384]{0}', space=vmem, size = 0x4000, scoped, tag = 'input window, operand 1, single buffered']
    #allocation7 [shape = 's32[1]{0}', space=sflag, size = 0x4, scoped, tag = 'scoped memory for tpu_custom_call.1']
    %12 = vsyncpa [#allocation5], 0
    %13 = vsyncpa [#allocation7], 0
    // Predicated region
    $region2: #{tpu_custom_call.1} parent=1 // pred_check
      _
    $region3: #{tpu_custom_call.1} parent=1 // pred_check_branch
      %15 = sbr.rel (0) target = $region5
    $region4: #{tpu_custom_call.1} parent=1 // pred_region
      %s17 = ssub.s32 128, 128
      %18 = vsyncadd [#allocation5], %s17
      %s20 = sshll.u32 [#allocation4], 4
      %s21 = int_to_ptr.vmem [resolvable:$true] %s20
      %23 = dma.hbm_to_vmem [thread:$0]  %s0, 128, %s21, [#allocation5]
    $region5: #{tpu_custom_call.1} parent=1 // pred_fallthru
      _
    // Predicated region
    $region6: #{tpu_custom_call.1} parent=1 // pred_check
      _
    $region7: #{tpu_custom_call.1} parent=1 // pred_check_branch
      %25 = sbr.rel (0) target = $region9
    $region8: #{tpu_custom_call.1} parent=1 // pred_region
      %s27 = ssub.s32 512, 512
      %28 = vsyncadd [#allocation7], %s27
      %s29 = sshll.u32 [#allocation6], 4
      %s30 = int_to_ptr.vmem [resolvable:$true] %s29
      %35 = dma.hbm_to_vmem [thread:$0]  %s1, 512, %s30, [#allocation7], 128, 128, 8
    $region9: #{tpu_custom_call.1} parent=1 // pred_fallthru
      _
    // Predicated region
    $region10: #{tpu_custom_call.1} parent=1 // pred_check
      _
    $region11: #{tpu_custom_call.1} parent=1 // pred_check_branch
      %37 = sbr.rel (0) target = $region13
    $region12: #{tpu_custom_call.1} parent=1 // pred_region
      _
    $region13: #{tpu_custom_call.1} parent=1 // pred_fallthru
      _
    // Predicated region
    $region14: #{tpu_custom_call.1} parent=1 // pred_check
      _
    $region15: #{tpu_custom_call.1} parent=1 // pred_check_branch
      %39 = sbr.rel (0) target = $region17
    $region16: #{tpu_custom_call.1} parent=1 // pred_region
      _
    $region17: #{tpu_custom_call.1} parent=1 // pred_fallthru
      _
    // Predicated region
    $region18: #{tpu_custom_call.1} parent=1 // pred_check
      _
    $region19: #{tpu_custom_call.1} parent=1 // pred_check_branch
      %41 = sbr.rel (0) target = $region21
    $region20: #{tpu_custom_call.1} parent=1 // pred_region
      _
    $region21: #{tpu_custom_call.1} parent=1 // pred_fallthru
      _
    // Predicated region
    $region22: #{tpu_custom_call.1} parent=1 // pred_check
      _
    $region23: #{tpu_custom_call.1} parent=1 // pred_check_branch
      %43 = sbr.rel (0) target = $region25
    $region24: #{tpu_custom_call.1} parent=1 // pred_region
      %44 = dma.done [#allocation5], 128
    $region25: #{tpu_custom_call.1} parent=1 // pred_fallthru
      _
    // Predicated region
    $region26: #{tpu_custom_call.1} parent=1 // pred_check
      _
    $region27: #{tpu_custom_call.1} parent=1 // pred_check_branch
      %46 = sbr.rel (0) target = $region29
    $region28: #{tpu_custom_call.1} parent=1 // pred_region
      %47 = dma.done [#allocation7], 512
    $region29: #{tpu_custom_call.1} parent=1 // pred_fallthru
      _
    %p48 = scmp.eq.s32.totalorder 0, 0
    // Predicated region
    $region30: #{tpu_custom_call.1} parent=1 // pred_check
      %p49 = pneg %p48
    $region31: #{tpu_custom_call.1} parent=1 // pred_check_branch
      %51 = sbr.rel (%p49) target = $region33
    $region32: #{tpu_custom_call.1} parent=1 // pred_region
      %vm52 = vcmask 261120
      %53 = vst.msk [vmem:[#allocation2] sm:$0xff] %vm52, 0.0
    $region33: #{tpu_custom_call.1} parent=1 // pred_fallthru
      _
    %v54 = vld [vmem:[#allocation2] sm:$0xff]
    %v55 = vld [vmem:[#allocation4] sm:$0xff]
    %v56 = vld [vmem:[#allocation6] sm:$0xff]
    %v57 = vld [vmem:[#allocation6 + $0x8] sm:$0xff]
    %v58 = vld [vmem:[#allocation6 + $0x10] sm:$0xff]
    %v59 = vld [vmem:[#allocation6 + $0x18] sm:$0xff]
    %vm60 = vcmask 261120
    %v62 = vsel %vm60, %v55, 0
    %64 = vmatprep.subr.mxu0 0.0
    %65 = vmatpush1.msra.mxu0 0.0
    %66 = vmatprep.subr.mxu0 0.0
    %67 = vmatpush1.msra.mxu0 0.0
    %68 = vmatprep.subr.mxu0 0.0
    %69 = vmatpush1.msra.mxu0 0.0
    %70 = vmatprep.subr.mxu0 0.0
    %71 = vmatpush1.msra.mxu0 0.0
    %72 = vmatprep.subr.mxu0 0.0
    %73 = vmatpush1.msra.mxu0 0.0
    %74 = vmatprep.subr.mxu0 0.0
    %75 = vmatpush1.msra.mxu0 0.0
    %76 = vmatprep.subr.mxu0 0.0
    %77 = vmatpush1.msra.mxu0 0.0
    %78 = vmatprep.subr.mxu0 0.0
    %79 = vmatpush1.msra.mxu0 0.0
    %80 = vmatprep.subr.mxu0 0.0
    %81 = vmatpush1.msra.mxu0 0.0
    %82 = vmatprep.subr.mxu0 0.0
    %83 = vmatpush1.msra.mxu0 0.0
    %84 = vmatprep.subr.mxu0 0.0
    %85 = vmatpush1.msra.mxu0 0.0
    %86 = vmatprep.subr.mxu0 0.0
    %87 = vmatpush1.msra.mxu0 0.0
    %88 = vmatprep.subr.mxu0 0.0
    %89 = vmatpush1.msra.mxu0 %v59
    %90 = vmatprep.subr.mxu0 0.0
    %91 = vmatpush1.msra.mxu0 %v58
    %92 = vmatprep.subr.mxu0 0.0
    %93 = vmatpush1.msra.mxu0 %v57
    %94 = vmatprep.subr.mxu0 0.0
    %95 = vmatpush1.msra.mxu0 %v56
    %96 = vmatprep.subr.mxu0 0.0
    %97 = vmatpush2.msra.mxu0 0.0
    %98 = vmatprep.subr.mxu0 0.0
    %99 = vmatpush2.msra.mxu0 0.0
    %100 = vmatprep.subr.mxu0 0.0
    %101 = vmatpush2.msra.mxu0 0.0
    %102 = vmatprep.subr.mxu0 0.0
    %103 = vmatpush2.msra.mxu0 0.0
    %104 = vmatprep.subr.mxu0 0.0
    %105 = vmatpush2.msra.mxu0 0.0
    %106 = vmatprep.subr.mxu0 0.0
    %107 = vmatpush2.msra.mxu0 0.0
    %108 = vmatprep.subr.mxu0 0.0
    %109 = vmatpush2.msra.mxu0 0.0
    %110 = vmatprep.subr.mxu0 0.0
    %111 = vmatpush2.msra.mxu0 0.0
    %112 = vmatprep.subr.mxu0 0.0
    %113 = vmatpush2.msra.mxu0 0.0
    %114 = vmatprep.subr.mxu0 0.0
    %115 = vmatpush2.msra.mxu0 0.0
    %116 = vmatprep.subr.mxu0 0.0
    %117 = vmatpush2.msra.mxu0 0.0
    %118 = vmatprep.subr.mxu0 0.0
    %119 = vmatpush2.msra.mxu0 0.0
    %120 = vmatprep.subr.mxu0 0.0
    %121 = vmatpush2.msra.mxu0 0.0
    %122 = vmatprep.subr.mxu0 0.0
    %123 = vmatpush2.msra.mxu0 0.0
    %124 = vmatprep.subr.mxu0 0.0
    %125 = vmatpush2.msra.mxu0 0.0
    %126 = vmatprep.subr.mxu0 0.0
    %127 = vmatpush2.msra.mxu0 0.0
    %128 = vmatprep.mubr.f32.mxu0 0.0
    %129 = vmatmul.mubr.f32.gmra.mxu0 %v62
    %v130 = vpop.f32.mrf.mxu0
    %v131 = vadd.f32 0.0, %v130
    %v132 = vpop.f32.mrf.mxu0
    %133 = vdwg.mxu0
    %v134 = vadd.f32 %v54, %v131
    %135 = vst.msk [vmem:[#allocation2] sm:$0xff] %vm60, %v134
    // Predicated region
    $region34: #{tpu_custom_call.1} parent=1 // pred_check
      %p136 = pneg %p48
    $region35: #{tpu_custom_call.1} parent=1 // pred_check_branch
      %138 = sbr.rel (%p136) target = $region37
    $region36: #{tpu_custom_call.1} parent=1 // pred_region
      %v139 = vld [vmem:[#allocation2] sm:$0xff]
      %v140 = vld [vmem:[%s2] sm:$0x1]
      %v142 = vlaneseq
      %v143 = vshrl.u32 %v142, 7
      %v144 = vsub.s32 0, %v143
      %v145 = vrot.slane %v140, %v144
      %v147 = vadd.f32 %v139, %v145
      %v148 = vmax.f32 %v147, 0.0
      %v149 = vld [vmem:[%s3] sm:$0x1]
      %v151 = vlaneseq
      %v152 = vshrl.u32 %v151, 7
      %v153 = vsub.s32 0, %v152
      %v154 = vrot.slane %v149, %v153
      %v156 = vmul.f32 %v148, %v154
      %v157 = vsel %vm60, %v156, 0.0
      %158 = vadd.xlane.f32.xlu0 %v157
      %v159 = vpop.xlane.xlu0 %158
      %v160 = vld [vmem:[#allocation3] sm:$0x1]
      %v162 = vlaneseq
      %v163 = vshrl.u32 %v162, 7
      %v164 = vsub.s32 0, %v163
      %v165 = vrot.slane %v160, %v164
      %v167 = vadd.f32 %v159, %v165
      %vm168 = vcmask 7168
      %169 = vst.msk [vmem:[%s5] sm:$0xff] %vm168, %v167
    $region37: #{tpu_custom_call.1} parent=1 // pred_fallthru
      _
    // Predicated region
    $region38: #{tpu_custom_call.1} parent=1 // pred_check
      _
    $region39: #{tpu_custom_call.1} parent=1 // pred_check_branch
      %171 = sbr.rel (0) target = $region41
    $region40: #{tpu_custom_call.1} parent=1 // pred_region
      _
    $region41: #{tpu_custom_call.1} parent=1 // pred_fallthru
      _
    // Predicated region
    $region42: #{tpu_custom_call.1} parent=1 // pred_check
      _
    $region43: #{tpu_custom_call.1} parent=1 // pred_check_branch
      %173 = sbr.rel (0) target = $region45
    $region44: #{tpu_custom_call.1} parent=1 // pred_region
      _
    $region45: #{tpu_custom_call.1} parent=1 // pred_fallthru
      _
    %174 = vsyncpa [#allocation5], 1
    %175 = vsyncpa [#allocation7], 1

</llo_original>
